<compile_context>
chip_gen: v5e
topology: v5e:2x2
jax: 0.10.0
libtpu: 0.0.40
codegen_flags: <defaults>
</compile_context>

<pallas_src>
import math

import jax
import jax.numpy as jnp
from jax.experimental import pallas as pl
from jax.experimental.pallas import tpu as pltpu

_NEG_INF = -1e30


def _round_up(x, m):
    return ((x + m - 1) // m) * m


def _make_kernel(seq_len, d_out, block_kv, needs_mask, mm_dtype):
    inv_scale = 1.0 / (float(d_out) ** 0.5)

    def kernel(xq_ref, xkv_ref, wq_ref, wkv_ref, o_ref,
               q_sc, m_sc, l_sc, acc_sc):
        kv = pl.program_id(1)

        @pl.when(kv == 0)
        def _init():
            # Q projection once per query tile (reused across the kv axis).
            # The 1/sqrt(d_out) scale is folded into q ([tq, d_out]) instead of
            # being applied to the [tq, tk] score tile.
            q_sc[...] = inv_scale * jnp.dot(
                xq_ref[...], wq_ref[...], preferred_element_type=jnp.float32)
            m_sc[...] = jnp.full(m_sc.shape, _NEG_INF, m_sc.dtype)
            l_sc[...] = jnp.zeros(l_sc.shape, l_sc.dtype)
            acc_sc[...] = jnp.zeros(acc_sc.shape, acc_sc.dtype)

        # Fused K/V projection for this kv tile: one MXU op, weights already
        # transposed to [d_in, 2*d_out] so no in-kernel transpose.
        kvp = jnp.dot(xkv_ref[...], wkv_ref[...],
                      preferred_element_type=jnp.float32)   # [tk, 2*d_out]
        k = kvp[:, :d_out]                                   # [tk, d_out]
        v = kvp[:, d_out:]                                   # [tk, d_out]

        # scores = q @ k.T via a transposed-B contraction (no k.T materialized).
        s = jax.lax.dot_general(
            q_sc[...].astype(mm_dtype), k.astype(mm_dtype),
            dimension_numbers=(((1,), (1,)), ((), ())),
            preferred_element_type=jnp.float32)              # [tq, tk]

        if needs_mask:
            # Mask padded key positions (seq padded up to a tile multiple).
            kv_ids = kv * block_kv + jax.lax.broadcasted_iota(
                jnp.int32, (1, block_kv), 1)
            s = jnp.where(kv_ids < seq_len, s, _NEG_INF)

        # Online softmax update.
        m_prev = m_sc[...]
        m_new = jnp.maximum(m_prev, jnp.max(s, axis=-1, keepdims=True))
        alpha = jnp.exp(m_prev - m_new)
        p = jnp.exp(s - m_new)
        l_sc[...] = alpha * l_sc[...] + jnp.sum(p, axis=-1, keepdims=True)
        acc_sc[...] = alpha * acc_sc[...] + jnp.dot(
            p.astype(mm_dtype), v.astype(mm_dtype),
            preferred_element_type=jnp.float32)
        m_sc[...] = m_new

        @pl.when(kv == pl.num_programs(1) - 1)
        def _finalize():
            # Multiply by reciprocal (EUP slot) instead of dividing (VALU).
            o_ref[...] = (acc_sc[...] *
                          pl.reciprocal(l_sc[...], approx=True)
                          ).astype(o_ref.dtype)

    return kernel


def self_attention_v2(x, w_query, w_key, w_value, *,
                      block_q=128, block_kv=128, use_bf16=False):
    """SelfAttention_v2.forward.

    x:                        [seq, d_in] float32
    w_query/w_key/w_value:    [d_out, d_in] (nn.Linear weight convention)
    returns:                  [seq, d_out] float32
    """
    seq, d_in = x.shape
    d_out = w_query.shape[0]

    # Clamp nominal 128-wide tiles for tiny sequences (8-aligned for the
    # sublane constraint) and pad seq to a common tile multiple.
    tq = min(block_q, _round_up(seq, 8))
    tk = min(block_kv, _round_up(seq, 8))
    s_pad = _round_up(seq, math.lcm(tq, tk))
    grid = (s_pad // tq, s_pad // tk)

    mm_dtype = jnp.bfloat16 if use_bf16 else jnp.float32

    # Wrapper-side layout plumbing (free): pre-transpose projection weights and
    # fuse K/V weights into a single [d_in, 2*d_out] operand.
    wq_t = w_query.T.astype(mm_dtype)                                     # [d_in, d_out]
    wkv_t = jnp.concatenate([w_key, w_value], axis=0).T.astype(mm_dtype)  # [d_in, 2*d_out]

    x_p = x
    if s_pad != seq:
        x_p = jnp.pad(x, ((0, s_pad - seq), (0, 0)))
    x_p = x_p.astype(mm_dtype)

    kernel = _make_kernel(seq, d_out, tk,
                          needs_mask=(s_pad != seq), mm_dtype=mm_dtype)

    # VMEM budget derived from the chosen tiles (double-buffered inputs/output,
    # scratch, score/prob temporaries) + headroom; clamped to a safe range for
    # v5e/v6e/v7x.
    itemsize = jnp.dtype(mm_dtype).itemsize
    vmem_bytes = int(
        2 * itemsize * (tq * d_in + tk * d_in)    # double-buffered x tiles
        + itemsize * (3 * d_in * d_out)           # resident weights
        + 2 * 4 * tq * d_out                      # double-buffered output tile
        + 4 * tq * (2 + 2 * d_out)                # m/l/q/acc scratch
        + 4 * 6 * tq * tk                         # score/prob temporaries
    ) + (2 << 20)
    vmem_limit = min(max(vmem_bytes, 16 << 20), 64 << 20)

    flops = int(
        2 * s_pad * d_in * d_out                  # q projection
        + grid[0] * 2 * s_pad * d_in * 2 * d_out  # fused k/v projection per q tile
        + 4 * s_pad * s_pad * d_out               # scores + p@v
    )
    cost = pl.CostEstimate(
        flops=flops,
        transcendentals=int(s_pad * s_pad + s_pad),
        bytes_accessed=int(x_p.nbytes * (1 + grid[0]) + wq_t.nbytes
                           + wkv_t.nbytes * grid[0] + s_pad * d_out * 4))

    out = pl.pallas_call(
        kernel,
        out_shape=jax.ShapeDtypeStruct((s_pad, d_out), jnp.float32),
        grid_spec=pltpu.PrefetchScalarGridSpec(
            num_scalar_prefetch=0,
            grid=grid,
            in_specs=[
                pl.BlockSpec((tq, d_in), lambda qi, ki: (qi, 0)),        # x (query tile)
                pl.BlockSpec((tk, d_in), lambda qi, ki: (ki, 0)),        # x (kv tile)
                pl.BlockSpec((d_in, d_out), lambda qi, ki: (0, 0)),      # Wq^T
                pl.BlockSpec((d_in, 2 * d_out), lambda qi, ki: (0, 0)),  # [Wk;Wv]^T
            ],
            out_specs=pl.BlockSpec((tq, d_out), lambda qi, ki: (qi, 0)),
            scratch_shapes=[
                pltpu.VMEM((tq, d_out), jnp.float32),   # scaled q
                pltpu.VMEM((tq, 1), jnp.float32),       # running max m
                pltpu.VMEM((tq, 1), jnp.float32),       # running denom l
                pltpu.VMEM((tq, d_out), jnp.float32),   # output accumulator
            ]),
        compiler_params=pltpu.CompilerParams(
            dimension_semantics=("parallel", "arbitrary"),
            vmem_limit_bytes=vmem_limit),
        cost_estimate=cost,
    )(x_p, x_p, wq_t, wkv_t)

    return out[:seq]


def _reference(x, wq, wk, wv):
    q = x @ wq.T
    k = x @ wk.T
    v = x @ wv.T
    scores = q @ k.T
    weights = jax.nn.softmax(scores / (k.shape[-1] ** 0.5), axis=-1)
    return weights @ v


if __name__ == "__main__":
    # Same token embeddings as the PyTorch example: seq=6, d_in=3, d_out=2.
    inputs = jnp.array(
        [[0.43, 0.15, 0.89],
         [0.55, 0.87, 0.66],
         [0.57, 0.85, 0.64],
         [0.22, 0.58, 0.33],
         [0.77, 0.25, 0.10],
         [0.05, 0.80, 0.55]],
        dtype=jnp.float32,
    )
    d_in = inputs.shape[-1]
    d_out = 2

    # Deterministic init mimicking nn.Linear's U(-1/sqrt(d_in), 1/sqrt(d_in)).
    key = jax.random.PRNGKey(0)
    kq, kk, kvk = jax.random.split(key, 3)
    bound = 1.0 / (d_in ** 0.5)
    w_query = jax.random.uniform(kq, (d_out, d_in), jnp.float32, -bound, bound)
    w_key = jax.random.uniform(kk, (d_out, d_in), jnp.float32, -bound, bound)
    w_value = jax.random.uniform(kvk, (d_out, d_in), jnp.float32, -bound, bound)

    out = jax.block_until_ready(self_attention_v2(inputs, w_query, w_key, w_value))
    ref = _reference(inputs, w_query, w_key, w_value)
    assert out.shape == (inputs.shape[0], d_out)
    assert jnp.allclose(out, ref, atol=2e-3, rtol=2e-3), float(jnp.abs(out - ref).max())

    # Larger check exercising multiple q/kv tiles, the online softmax and the
    # padded-key masking (seq=192 -> padded to 256 with 128x128 tiles).
    k2 = jax.random.PRNGKey(1)
    kx, ka, kb, kc = jax.random.split(k2, 4)
    seq2, din2, dout2 = 192, 16, 32
    x2 = jax.random.normal(kx, (seq2, din2), jnp.float32)
    b2 = 1.0 / (din2 ** 0.5)
    wq2 = jax.random.uniform(ka, (dout2, din2), jnp.float32, -b2, b2)
    wk2 = jax.random.uniform(kb, (dout2, din2), jnp.float32, -b2, b2)
    wv2 = jax.random.uniform(kc, (dout2, din2), jnp.float32, -b2, b2)
    out2 = jax.block_until_ready(self_attention_v2(x2, wq2, wk2, wv2))
    ref2 = _reference(x2, wq2, wk2, wv2)
    assert jnp.allclose(out2, ref2, atol=2e-3, rtol=2e-3), float(jnp.abs(out2 - ref2).max())

    print("KERNEL_OK")
</pallas_src>

<mosaic_0001>
module attributes {stable_mosaic.version = 11 : i64} {
  func.func @kernel(%arg0: i32, %arg1: i32, %arg2: memref<8x3xf32, #tpu.memory_space<vmem>>, %arg3: memref<8x3xf32, #tpu.memory_space<vmem>>, %arg4: memref<3x2xf32, #tpu.memory_space<vmem>>, %arg5: memref<3x4xf32, #tpu.memory_space<vmem>>, %arg6: memref<8x2xf32, #tpu.memory_space<vmem>>, %arg7: memref<8x2xf32, #tpu.memory_space<vmem>>, %arg8: memref<8x1xf32, #tpu.memory_space<vmem>>, %arg9: memref<8x1xf32, #tpu.memory_space<vmem>>, %arg10: memref<8x2xf32, #tpu.memory_space<vmem>>) attributes {dimension_semantics = [#tpu.dimension_semantics<parallel>, #tpu.dimension_semantics<arbitrary>], iteration_bounds = array<i64: 1, 1>, scalar_prefetch = 0 : i64, scratch_operands = 4 : i64, tpu.core_type = #tpu.core_type<tc>, window_params = [{transform_indices = @transform_0, window_bounds = array<i64: 8, 3>}, {transform_indices = @transform_1, window_bounds = array<i64: 8, 3>}, {pipeline_mode = #tpu.pipeline_mode<synchronous>, transform_indices = @transform_2, window_bounds = array<i64: 3, 2>}, {pipeline_mode = #tpu.pipeline_mode<synchronous>, transform_indices = @transform_3, window_bounds = array<i64: 3, 4>}, {transform_indices = @transform_4, window_bounds = array<i64: 8, 2>}]} {
    %c0_i32 = arith.constant 0 : i32
    %0 = arith.cmpi eq, %arg1, %c0_i32 : i32
    %1 = arith.extui %0 : i1 to i32
    %c0_i32_0 = arith.constant 0 : i32
    %2 = arith.cmpi ne, %1, %c0_i32_0 : i32
    scf.if %2 {
      %c0_25 = arith.constant 0 : index
      %c0_26 = arith.constant 0 : index
      %45 = vector.load %arg2[%c0_25, %c0_26] : memref<8x3xf32, #tpu.memory_space<vmem>>, vector<8x3xf32>
      %c0_27 = arith.constant 0 : index
      %c0_28 = arith.constant 0 : index
      %46 = vector.load %arg4[%c0_27, %c0_28] : memref<3x2xf32, #tpu.memory_space<vmem>>, vector<3x2xf32>
      %cst_29 = arith.constant dense<0.000000e+00> : vector<8x2xf32>
      %47 = tpu.matmul %45, %46, %cst_29 {dimension_numbers = #tpu.dot_dimension_numbers<[1], [0], [0], [1], [0, 0, 1, 1], [], []>} : vector<8x3xf32>, vector<3x2xf32>, vector<8x2xf32> -> vector<8x2xf32>
      %cst_30 = arith.constant 0.707106769 : f32
      %48 = vector.broadcast %cst_30 : f32 to vector<8x2xf32>
      %49 = arith.mulf %48, %47 : vector<8x2xf32>
      %c0_31 = arith.constant 0 : index
      %c0_32 = arith.constant 0 : index
      %50 = vector.load %arg7[%c0_31, %c0_32] : memref<8x2xf32, #tpu.memory_space<vmem>>, vector<8x2xf32>
      tpu.vector_store %arg7[%c0_31, %c0_32], %49 {strides = array<i32>} : memref<8x2xf32, #tpu.memory_space<vmem>>, vector<8x2xf32>,
      %cst_33 = arith.constant -1.000000e+30 : f32
      %51 = vector.broadcast %cst_33 : f32 to vector<8x1xf32>
      %c0_34 = arith.constant 0 : index
      %c0_35 = arith.constant 0 : index
      %52 = vector.load %arg8[%c0_34, %c0_35] : memref<8x1xf32, #tpu.memory_space<vmem>>, vector<8x1xf32>
      tpu.vector_store %arg8[%c0_34, %c0_35], %51 {strides = array<i32>} : memref<8x1xf32, #tpu.memory_space<vmem>>, vector<8x1xf32>,
      %cst_36 = arith.constant 0.000000e+00 : f32
      %53 = vector.broadcast %cst_36 : f32 to vector<8x1xf32>
      %c0_37 = arith.constant 0 : index
      %c0_38 = arith.constant 0 : index
      %54 = vector.load %arg9[%c0_37, %c0_38] : memref<8x1xf32, #tpu.memory_space<vmem>>, vector<8x1xf32>
      tpu.vector_store %arg9[%c0_37, %c0_38], %53 {strides = array<i32>} : memref<8x1xf32, #tpu.memory_space<vmem>>, vector<8x1xf32>,
      %cst_39 = arith.constant 0.000000e+00 : f32
      %55 = vector.broadcast %cst_39 : f32 to vector<8x2xf32>
      %c0_40 = arith.constant 0 : index
      %c0_41 = arith.constant 0 : index
      %56 = vector.load %arg10[%c0_40, %c0_41] : memref<8x2xf32, #tpu.memory_space<vmem>>, vector<8x2xf32>
      tpu.vector_store %arg10[%c0_40, %c0_41], %55 {strides = array<i32>} : memref<8x2xf32, #tpu.memory_space<vmem>>, vector<8x2xf32>,
    } else {
    }
    %c0 = arith.constant 0 : index
    %c0_1 = arith.constant 0 : index
    %3 = vector.load %arg3[%c0, %c0_1] : memref<8x3xf32, #tpu.memory_space<vmem>>, vector<8x3xf32>
    %c0_2 = arith.constant 0 : index
    %c0_3 = arith.constant 0 : index
    %4 = vector.load %arg5[%c0_2, %c0_3] : memref<3x4xf32, #tpu.memory_space<vmem>>, vector<3x4xf32>
    %cst = arith.constant dense<0.000000e+00> : vector<8x4xf32>
    %5 = tpu.matmul %3, %4, %cst {dimension_numbers = #tpu.dot_dimension_numbers<[1], [0], [0], [1], [0, 0, 1, 1], [], []>} : vector<8x3xf32>, vector<3x4xf32>, vector<8x4xf32> -> vector<8x4xf32>
    %6 = vector.extract_strided_slice %5 {offsets = [0, 0], sizes = [8, 2], strides = [1, 1]} : vector<8x4xf32> to vector<8x2xf32>
    %7 = vector.extract_strided_slice %5 {offsets = [0, 2], sizes = [8, 2], strides = [1, 1]} : vector<8x4xf32> to vector<8x2xf32>
    %c0_4 = arith.constant 0 : index
    %c0_5 = arith.constant 0 : index
    %8 = vector.load %arg7[%c0_4, %c0_5] : memref<8x2xf32, #tpu.memory_space<vmem>>, vector<8x2xf32>
    %cst_6 = arith.constant dense<0.000000e+00> : vector<8x8xf32>
    %9 = tpu.matmul %8, %6, %cst_6 {dimension_numbers = #tpu.dot_dimension_numbers<[1], [1], [0], [0], [0, 0, 1, 0], [], []>} : vector<8x2xf32>, vector<8x2xf32>, vector<8x8xf32> -> vector<8x8xf32>
    %c8_i32 = arith.constant 8 : i32
    %10 = arith.muli %arg1, %c8_i32 : i32
    %11 = tpu.iota {dimensions = array<i32: 1>} : vector<1x8xi32>
    %12 = vector.broadcast %10 : i32 to vector<1x8xi32>
    %13 = arith.addi %12, %11 : vector<1x8xi32>
    %c6_i32 = arith.constant 6 : i32
    %14 = vector.broadcast %c6_i32 : i32 to vector<1x8xi32>
    %15 = arith.cmpi slt, %13, %14 : vector<1x8xi32>
    %cst_7 = arith.constant -1.000000e+30 : f32
    %16 = vector.shape_cast %15 : vector<1x8xi1> to vector<1x8xi1>
    %17 = vector.broadcast %16 : vector<1x8xi1> to vector<8x8xi1>
    %18 = vector.broadcast %cst_7 : f32 to vector<8x8xf32>
    %19 = arith.select %17, %9, %18 : vector<8x8xi1>, vector<8x8xf32>
    %c0_8 = arith.constant 0 : index
    %c0_9 = arith.constant 0 : index
    %20 = vector.load %arg8[%c0_8, %c0_9] : memref<8x1xf32, #tpu.memory_space<vmem>>, vector<8x1xf32>
    %cst_10 = arith.constant dense<0xFF800000> : vector<8xf32>
    %21 = vector.multi_reduction <maximumf>, %19, %cst_10 [1] : vector<8x8xf32> to vector<8xf32>
    %22 = vector.shape_cast %21 : vector<8xf32> to vector<8x1xf32>
    %23 = arith.maximumf %20, %22 : vector<8x1xf32>
    %24 = arith.subf %20, %23 : vector<8x1xf32>
    %25 = math.exp %24 : vector<8x1xf32>
    %26 = vector.broadcast %23 : vector<8x1xf32> to vector<8x8xf32>
    %27 = arith.subf %19, %26 : vector<8x8xf32>
    %28 = math.exp %27 : vector<8x8xf32>
    %c0_11 = arith.constant 0 : index
    %c0_12 = arith.constant 0 : index
    %29 = vector.load %arg9[%c0_11, %c0_12] : memref<8x1xf32, #tpu.memory_space<vmem>>, vector<8x1xf32>
    %30 = arith.mulf %25, %29 : vector<8x1xf32>
    %cst_13 = arith.constant dense<0.000000e+00> : vector<8xf32>
    %31 = vector.multi_reduction <add>, %28, %cst_13 [1] : vector<8x8xf32> to vector<8xf32>
    %32 = vector.shape_cast %31 : vector<8xf32> to vector<8x1xf32>
    %33 = arith.addf %30, %32 : vector<8x1xf32>
    %c0_14 = arith.constant 0 : index
    %c0_15 = arith.constant 0 : index
    %34 = vector.load %arg9[%c0_14, %c0_15] : memref<8x1xf32, #tpu.memory_space<vmem>>, vector<8x1xf32>
    tpu.vector_store %arg9[%c0_14, %c0_15], %33 {strides = array<i32>} : memref<8x1xf32, #tpu.memory_space<vmem>>, vector<8x1xf32>,
    %c0_16 = arith.constant 0 : index
    %c0_17 = arith.constant 0 : index
    %35 = vector.load %arg10[%c0_16, %c0_17] : memref<8x2xf32, #tpu.memory_space<vmem>>, vector<8x2xf32>
    %36 = vector.broadcast %25 : vector<8x1xf32> to vector<8x2xf32>
    %37 = arith.mulf %36, %35 : vector<8x2xf32>
    %cst_18 = arith.constant dense<0.000000e+00> : vector<8x2xf32>
    %38 = tpu.matmul %28, %7, %cst_18 {dimension_numbers = #tpu.dot_dimension_numbers<[1], [0], [0], [1], [0, 0, 1, 1], [], []>} : vector<8x8xf32>, vector<8x2xf32>, vector<8x2xf32> -> vector<8x2xf32>
    %39 = arith.addf %37, %38 : vector<8x2xf32>
    %c0_19 = arith.constant 0 : index
    %c0_20 = arith.constant 0 : index
    %40 = vector.load %arg10[%c0_19, %c0_20] : memref<8x2xf32, #tpu.memory_space<vmem>>, vector<8x2xf32>
    tpu.vector_store %arg10[%c0_19, %c0_20], %39 {strides = array<i32>} : memref<8x2xf32, #tpu.memory_space<vmem>>, vector<8x2xf32>,
    %c0_21 = arith.constant 0 : index
    %c0_22 = arith.constant 0 : index
    %41 = vector.load %arg8[%c0_21, %c0_22] : memref<8x1xf32, #tpu.memory_space<vmem>>, vector<8x1xf32>
    tpu.vector_store %arg8[%c0_21, %c0_22], %23 {strides = array<i32>} : memref<8x1xf32, #tpu.memory_space<vmem>>, vector<8x1xf32>,
    %c0_i32_23 = arith.constant 0 : i32
    %42 = arith.cmpi eq, %arg1, %c0_i32_23 : i32
    %43 = arith.extui %42 : i1 to i32
    %c0_i32_24 = arith.constant 0 : i32
    %44 = arith.cmpi ne, %43, %c0_i32_24 : i32
    scf.if %44 {
      %c0_25 = arith.constant 0 : index
      %c0_26 = arith.constant 0 : index
      %45 = vector.load %arg10[%c0_25, %c0_26] : memref<8x2xf32, #tpu.memory_space<vmem>>, vector<8x2xf32>
      %c0_27 = arith.constant 0 : index
      %c0_28 = arith.constant 0 : index
      %46 = vector.load %arg9[%c0_27, %c0_28] : memref<8x1xf32, #tpu.memory_space<vmem>>, vector<8x1xf32>
      %47 = tpu.reciprocal %46 {approx = true} : vector<8x1xf32> -> vector<8x1xf32>
      %48 = vector.broadcast %47 : vector<8x1xf32> to vector<8x2xf32>
      %49 = arith.mulf %45, %48 : vector<8x2xf32>
      %c0_29 = arith.constant 0 : index
      %c0_30 = arith.constant 0 : index
      %50 = vector.load %arg6[%c0_29, %c0_30] : memref<8x2xf32, #tpu.memory_space<vmem>>, vector<8x2xf32>
      tpu.vector_store %arg6[%c0_29, %c0_30], %49 {strides = array<i32>} : memref<8x2xf32, #tpu.memory_space<vmem>>, vector<8x2xf32>,
    } else {
    }
    return
  }
  func.func @transform_0(%arg0: i32, %arg1: i32) -> (i32, i32) {
    %c0_i32 = arith.constant 0 : i32
    %c0_i32_0 = arith.constant 0 : i32
    return %arg0, %c0_i32 : i32, i32
  }
  func.func @transform_1(%arg0: i32, %arg1: i32) -> (i32, i32) {
    %c0_i32 = arith.constant 0 : i32
    %c0_i32_0 = arith.constant 0 : i32
    return %arg1, %c0_i32 : i32, i32
  }
  func.func @transform_2(%arg0: i32, %arg1: i32) -> (i32, i32) {
    %c0_i32 = arith.constant 0 : i32
    %c0_i32_0 = arith.constant 0 : i32
    %c0_i32_1 = arith.constant 0 : i32
    return %c0_i32, %c0_i32_0 : i32, i32
  }
  func.func @transform_3(%arg0: i32, %arg1: i32) -> (i32, i32) {
    %c0_i32 = arith.constant 0 : i32
    %c0_i32_0 = arith.constant 0 : i32
    %c0_i32_1 = arith.constant 0 : i32
    return %c0_i32, %c0_i32_0 : i32, i32
  }
  func.func @transform_4(%arg0: i32, %arg1: i32) -> (i32, i32) {
    %c0_i32 = arith.constant 0 : i32
    %c0_i32_0 = arith.constant 0 : i32
    return %arg0, %c0_i32 : i32, i32
  }
}

</mosaic_0001>

<llo_original>
// kernel: tpu_custom_call.1
$region0: #{tpu_custom_call.1}
  #allocation0 [shape = 'u32[]', space=smem, size = 0x4, offset = 0x4, fixed_abs, tag = 'smem constant byte address 0x4 - core index']
  #allocation1 [shape = 'u32[72,128]{1,0:T(1,128)}', space=vmem, size = 0x9000, scoped, tag = 'internal scratch']
  #allocation2 [shape = 'f32[8,2]{1,0:T(8,128)}', space=vmem, size = 0x1000, scoped, tag = 'scratch operand']
  #allocation3 [shape = 'f32[8,1]{1,0:T(8,128)}', space=vmem, size = 0x1000, scoped, tag = 'scratch operand']
  #allocation4 [shape = 'f32[8,1]{1,0:T(8,128)}', space=vmem, size = 0x1000, scoped, tag = 'scratch operand']
  #allocation5 [shape = 'f32[8,2]{1,0:T(8,128)}', space=vmem, size = 0x1000, scoped, tag = 'scratch operand']
  %s0 = inlined_call_operand.vmem [shape: f32[8,3], index: 0, kind: input, shape index: {}]
  %s1 = inlined_call_operand.vmem [shape: f32[8,3], index: 1, kind: input, shape index: {}]
  %s2 = inlined_call_operand.vmem [shape: f32[3,2], index: 2, kind: input, shape index: {}]
  %s3 = inlined_call_operand.vmem [shape: f32[3,4], index: 3, kind: input, shape index: {}]
  %s4 = inlined_call_operand.vmem [shape: f32[8,2], index: 4, kind: output, shape index: {}]
  %s5 = sld [smem:[#allocation0]]
  $region34: #{tpu_custom_call.1} parent=0
    _
  %s7 = ssub.s32 1, %s5
  %s8 = scalar_select 0, %s7, %s5
  // Predicated region
  $region2: #{tpu_custom_call.1} parent=0 // pred_check
    _
  $region3: #{tpu_custom_call.1} parent=0 // pred_check_branch
    %10 = sbr.rel (0) target = $region5
  $region4: #{tpu_custom_call.1} parent=0 // pred_region
    _
  $region5: #{tpu_custom_call.1} parent=0 // pred_fallthru
    _
  // Predicated region
  $region6: #{tpu_custom_call.1} parent=0 // pred_check
    _
  $region7: #{tpu_custom_call.1} parent=0 // pred_check_branch
    %12 = sbr.rel (0) target = $region9
  $region8: #{tpu_custom_call.1} parent=0 // pred_region
    _
  $region9: #{tpu_custom_call.1} parent=0 // pred_fallthru
    _
  // Predicated region
  $region10: #{tpu_custom_call.1} parent=0 // pred_check
    _
  $region11: #{tpu_custom_call.1} parent=0 // pred_check_branch
    %14 = sbr.rel (0) target = $region13
  $region12: #{tpu_custom_call.1} parent=0 // pred_region
    _
  $region13: #{tpu_custom_call.1} parent=0 // pred_fallthru
    _
  // Predicated region
  $region14: #{tpu_custom_call.1} parent=0 // pred_check
    _
  $region15: #{tpu_custom_call.1} parent=0 // pred_check_branch
    %16 = sbr.rel (0) target = $region17
  $region16: #{tpu_custom_call.1} parent=0 // pred_region
    _
  $region17: #{tpu_custom_call.1} parent=0 // pred_fallthru
    _
  %p17 = scmp.eq.s32.totalorder 0, 0
  // Predicated region
  $region18: #{tpu_custom_call.1} parent=0 // pred_check
    %p18 = pneg %p17
  $region19: #{tpu_custom_call.1} parent=0 // pred_check_branch
    %20 = sbr.rel (%p18) target = $region21
  $region20: #{tpu_custom_call.1} parent=0 // pred_region
    %v21 = vld [vmem:[%s0] sm:$0xff]
    %v22 = vld [vmem:[%s2] sm:$0x7]
    %vm23 = vcmask 23552
    %v25 = vsel %vm23, %v21, 0
    %vm27 = vcmask 1042432
    %v29 = vsel %vm27, %v22, 0
    %31 = vmatpush.msra.mxu0 0.0
    %32 = vmatpush.msra.mxu0 0.0
    %33 = vmatpush.msra.mxu0 0.0
    %34 = vmatpush.msra.mxu0 0.0
    %35 = vmatpush.msra.mxu0 0.0
    %36 = vmatpush.msra.mxu0 0.0
    %37 = vmatpush.msra.mxu0 0.0
    %38 = vmatpush.msra.mxu0 0.0
    %39 = vmatpush.msra.mxu0 0.0
    %40 = vmatpush.msra.mxu0 0.0
    %41 = vmatpush.msra.mxu0 0.0
    %42 = vmatpush.msra.mxu0 0.0
    %43 = vmatpush.msra.mxu0 0.0
    %44 = vmatpush.msra.mxu0 0.0
    %45 = vmatpush.msra.mxu0 0.0
    %46 = vmatpush.msra.mxu0 %v29
    %47 = vmatmul.f32.gmra.mxu0 %v25
    %v48 = vpop.f32.mrf.mxu0
    %v49 = vadd.f32 0.0, %v48
    %50 = vdwg.mxu0
    %v51 = vmul.f32 %v49, 0.70710677
    %vm52 = vcmask 15360
    %53 = vst.msk [vmem:[#allocation2] sm:$0xff] %vm52, %v51
    %vm54 = vcmask 7168
    %55 = vst.msk [vmem:[#allocation3] sm:$0xff] %vm54, -1e+30
    %56 = vst.msk [vmem:[#allocation4] sm:$0xff] %vm54, 0.0
    %57 = vst.msk [vmem:[#allocation5] sm:$0xff] %vm52, 0.0
  $region21: #{tpu_custom_call.1} parent=0 // pred_fallthru
    _
  %v58 = vld [vmem:[%s1] sm:$0xff]
  %v59 = vld [vmem:[%s3] sm:$0x7]
  %vm60 = vcmask 23552
  %v62 = vsel %vm60, %v58, 0
  %vm64 = vcmask 1042432
  %v66 = vsel %vm64, %v59, 0
  %68 = vmatpush.msra.mxu0 0.0
  %69 = vmatpush.msra.mxu0 0.0
  %70 = vmatpush.msra.mxu0 0.0
  %71 = vmatpush.msra.mxu0 0.0
  %72 = vmatpush.msra.mxu0 0.0
  %73 = vmatpush.msra.mxu0 0.0
  %74 = vmatpush.msra.mxu0 0.0
  %75 = vmatpush.msra.mxu0 0.0
  %76 = vmatpush.msra.mxu0 0.0
  %77 = vmatpush.msra.mxu0 0.0
  %78 = vmatpush.msra.mxu0 0.0
  %79 = vmatpush.msra.mxu0 0.0
  %80 = vmatpush.msra.mxu0 0.0
  %81 = vmatpush.msra.mxu0 0.0
  %82 = vmatpush.msra.mxu0 0.0
  %83 = vmatpush.msra.mxu0 %v66
  %84 = vmatmul.f32.gmra.mxu0 %v62
  %v85 = vpop.f32.mrf.mxu0
  %v86 = vadd.f32 0.0, %v85
  %87 = vdwg.mxu0
  %v88 = vld [vmem:[#allocation2] sm:$0xff]
  %vm89 = vcmask 15360
  %v91 = vsel %vm89, %v88, 0
  %v94 = vsel %vm89, %v86, 0
  %96 = vmatpush.xpose.msra.mxu0 0.0
  %97 = vmatpush.xpose.msra.mxu0 0.0
  %98 = vmatpush.xpose.msra.mxu0 0.0
  %99 = vmatpush.xpose.msra.mxu0 0.0
  %100 = vmatpush.xpose.msra.mxu0 0.0
  %101 = vmatpush.xpose.msra.mxu0 0.0
  %102 = vmatpush.xpose.msra.mxu0 0.0
  %103 = vmatpush.xpose.msra.mxu0 0.0
  %104 = vmatpush.xpose.msra.mxu0 0.0
  %105 = vmatpush.xpose.msra.mxu0 0.0
  %106 = vmatpush.xpose.msra.mxu0 0.0
  %107 = vmatpush.xpose.msra.mxu0 0.0
  %108 = vmatpush.xpose.msra.mxu0 0.0
  %109 = vmatpush.xpose.msra.mxu0 0.0
  %110 = vmatpush.xpose.msra.mxu0 0.0
  %111 = vmatpush.xpose.msra.mxu0 %v94
  %112 = vmatmul.f32.gmra.mxu0 %v91
  %v113 = vpop.f32.mrf.mxu0
  %v114 = vadd.f32 0.0, %v113
  %115 = vdwg.mxu0
  %s116 = smul.u32 0, 8
  %v117 = vlaneseq
  %v118 = vand.u32 %v117, 127
  %v119 = vstv %s116
  %v120 = vadd.s32 %v119, %v118
  %vm121 = vcmp.lt.s32.totalorder %v120, 6
  %v122 = vsel %vm121, 1, 0
  %vm123 = vcmp.eq.s32.totalorder %v122, 1
  %v124 = vsel %vm123, %v114, -1e+30
  %v125 = vld [vmem:[#allocation3] sm:$0xff]
  %vm126 = vcmask 64512
  %v127 = vsel %vm126, %v124, -inf
  %128 = vmax.xlane.f32.xlu0 %v127
  %v129 = vpop.xlane.xlu0 %128
  %v130 = vmax.f32 %v125, %v129
  %v131 = vsub.f32 %v125, %v130
  %v132 = vmul.f32 %v131, 1.442695
  %v133 = vpow.pop %v132
  %135 = vset.pattern.permute.xlu0 0
  %136 = vperm.xlu0 %135, %v130
  %v137 = vpop.permute.xlu0 %136
  %v139 = vsub.f32 %v124, %v137
  %v140 = vmul.f32 %v139, 1.442695
  %v141 = vpow.pop %v140
  %v142 = vld [vmem:[#allocation4] sm:$0xff]
  %v143 = vmul.f32 %v133, %v142
  %v144 = vsel %vm126, %v141, 0.0
  %145 = vadd.xlane.f32.xlu0 %v144
  %v146 = vpop.xlane.xlu0 %145
  %v147 = vadd.f32 %v143, %v146
  %vm148 = vcmask 7168
  %149 = vst.msk [vmem:[#allocation4] sm:$0xff] %vm148, %v147
  %v150 = vld [vmem:[#allocation5] sm:$0xff]
  %152 = vset.pattern.permute.xlu0 0
  %153 = vperm.xlu0 %152, %v133
  %v154 = vpop.permute.xlu0 %153
  %v156 = vmul.f32 %v154, %v150
  %157 = vrot.lane.b32.xlu0 %v86, 126
  %v158 = vpop.permute.xlu0 %157
  %v161 = vsel %vm126, %v141, 0
  %163 = vmatpush.msra.mxu0 0.0
  %164 = vmatpush.msra.mxu0 0.0
  %165 = vmatpush.msra.mxu0 0.0
  %166 = vmatpush.msra.mxu0 0.0
  %167 = vmatpush.msra.mxu0 0.0
  %168 = vmatpush.msra.mxu0 0.0
  %169 = vmatpush.msra.mxu0 0.0
  %170 = vmatpush.msra.mxu0 0.0
  %171 = vmatpush.msra.mxu0 0.0
  %172 = vmatpush.msra.mxu0 0.0
  %173 = vmatpush.msra.mxu0 0.0
  %174 = vmatpush.msra.mxu0 0.0
  %175 = vmatpush.msra.mxu0 0.0
  %176 = vmatpush.msra.mxu0 0.0
  %177 = vmatpush.msra.mxu0 0.0
  %178 = vmatpush.msra.mxu0 %v158
  %179 = vmatmul.f32.gmra.mxu0 %v161
  %v180 = vpop.f32.mrf.mxu0
  %v181 = vadd.f32 0.0, %v180
  %182 = vdwg.mxu0
  %v183 = vadd.f32 %v156, %v181
  %184 = vst.msk [vmem:[#allocation5] sm:$0xff] %vm89, %v183
  %185 = vst.msk [vmem:[#allocation3] sm:$0xff] %vm148, %v130
  // Predicated region
  $region22: #{tpu_custom_call.1} parent=0 // pred_check
    %p186 = pneg %p17
  $region23: #{tpu_custom_call.1} parent=0 // pred_check_branch
    %188 = sbr.rel (%p186) target = $region25
  $region24: #{tpu_custom_call.1} parent=0 // pred_region
    %v189 = vld [vmem:[#allocation5] sm:$0xff]
    %v190 = vld [vmem:[#allocation4] sm:$0xff]
    %v191 = vrcp.pop %v190
    %193 = vset.pattern.permute.xlu0 0
    %194 = vperm.xlu0 %193, %v191
    %v195 = vpop.permute.xlu0 %194
    %v197 = vmul.f32 %v189, %v195
    %198 = vst.msk [vmem:[%s4] sm:$0xff] %vm89, %v197
  $region25: #{tpu_custom_call.1} parent=0 // pred_fallthru
    _
  // Predicated region
  $region26: #{tpu_custom_call.1} parent=0 // pred_check
    _
  $region27: #{tpu_custom_call.1} parent=0 // pred_check_branch
    %200 = sbr.rel (0) target = $region29
  $region28: #{tpu_custom_call.1} parent=0 // pred_region
    _
  $region29: #{tpu_custom_call.1} parent=0 // pred_fallthru
    _
  // Predicated region
  $region30: #{tpu_custom_call.1} parent=0 // pred_check
    _
  $region31: #{tpu_custom_call.1} parent=0 // pred_check_branch
    %202 = sbr.rel (0) target = $region33
  $region32: #{tpu_custom_call.1} parent=0 // pred_region
    _
  $region33: #{tpu_custom_call.1} parent=0 // pred_fallthru
    _

</llo_original>
